<compile_context>
chip_gen: v7x
topology: tpu7x:2x2x1
jax: 0.10.0
libtpu: 0.0.40
codegen_flags: <defaults>
</compile_context>

<pallas_src>
import functools

import jax
import jax.numpy as jnp
import numpy as np
from jax.experimental import pallas as pl
from jax.experimental.pallas import tpu as pltpu

Z_BLK = 8        # z-grid points per block (sublane axis)
N = 128          # quadrature samples over u in (0, 1) (lane axis)
OUT_LANES = 128  # lane-dense output slab; results live in lanes 0 and 1
L_LAYERS = 3     # meta-dendrite layers, each a (2, 2) weight + (2,) bias
N_PARAMS = 1 + 4 * L_LAYERS + 2 * L_LAYERS   # [a | LL flat | LLB flat] = 19


def _dnnp_kernel(zwb_ref, params_ref, out_ref, *, n_layers):
    zs = zwb_ref[0]                  # (Z_BLK, 1)
    w = zwb_ref[1]                   # (Z_BLK, 1)
    b = zwb_ref[2]                   # (Z_BLK, 1)
    a = params_ref[0]                # scalar (SMEM)

    # midpoint quadrature samples on (0, 1), generated in-kernel (no DMA)
    lane = jax.lax.broadcasted_iota(jnp.int32, (1, N), 1).astype(jnp.float32)
    u = (lane + 0.5) * (1.0 / N)     # (1, N)
    u2 = u * u
    u4 = u2 * u2
    inv_u2 = pl.reciprocal(u2, approx=False)       # tiny (1, N) row

    def z2fz(z):
        return z * z * (w * z) + b

    zu = zs * u                                    # (Z_BLK, N) integrand grid
    hzu = 1.0 + a * zu - z2fz(zu)                  # H(zs*u)
    gzu = (1.0 - zu) * (hzu + zu)                  # G(zs*u) == (1-z)(1+(a+1)z-z2fz)
    hz = 1.0 + a * zs - z2fz(zs)                   # H(zs), (Z_BLK, 1)

    inv_hz = pl.reciprocal(hz, approx=False)       # tiny (Z_BLK, 1) column
    t = hzu * inv_hz
    hr = t * t
    hr = jnp.where(hr < u4, hr, hr + u4)

    rad = gzu * hzu * (hr - u4)
    rs = jax.lax.rsqrt(rad)                        # single full-grid EUP pass
    sq = rad * rs                                  # == sqrt(rad)

    integ1 = (2.0 * zs) * u2 * rs
    integ2 = (sq - 1.0) * inv_u2

    # deterministic midpoint quadrature over [0, 1]
    l_m = jnp.mean(integ1, axis=1, keepdims=True)            # (Z_BLK, 1)
    c_m = -1.0 + jnp.mean(integ2, axis=1, keepdims=True)     # (Z_BLK, 1)
    inv_zs = pl.reciprocal(zs, approx=False)
    s_m = 0.5 * hz * l_m * inv_zs * inv_zs + c_m * inv_zs    # (Z_BLK, 1)

    # meta-dendrite stack: equ = ReLU(LL @ equ + LLB), equ rows = (l, S)
    # kept on the VPU as scalar-broadcast FMAs (2x2 weights, MXU would be waste)
    e0, e1 = l_m, s_m
    wt_off = 1
    bias_off = 1 + 4 * n_layers
    for layer in range(n_layers):
        w00 = params_ref[wt_off + 4 * layer + 0]
        w01 = params_ref[wt_off + 4 * layer + 1]
        w10 = params_ref[wt_off + 4 * layer + 2]
        w11 = params_ref[wt_off + 4 * layer + 3]
        bb0 = params_ref[bias_off + 2 * layer + 0]
        bb1 = params_ref[bias_off + 2 * layer + 1]
        n0 = jnp.maximum(w00 * e0 + w01 * e1 + bb0, 0.0)
        n1 = jnp.maximum(w10 * e0 + w11 * e1 + bb1, 0.0)
        e0, e1 = n0, n1

    # one unmasked, lane-dense store: l in lane 0, S in lane 1, zeros elsewhere
    lane_i = jax.lax.broadcasted_iota(jnp.int32, (Z_BLK, OUT_LANES), 1)
    out_ref[...] = jnp.where(lane_i == 0, e0, jnp.where(lane_i == 1, e1, 0.0))


def dnnp_forward(zs, w, b, a, ll, llb):
    """Pallas-backed DNNP.forward(): returns (resl, resS), each shape (Z,).

    Z = zs.shape[0] must be a multiple of 8; the kernel runs a 1-D "parallel"
    grid of (8, 128) blocks so batched parameter sets shard across TensorCores.
    """
    zt = zs.shape[0]
    assert zt % Z_BLK == 0, "number of z-points must be a multiple of 8"
    n_blocks = zt // Z_BLK

    # pack the three per-z columns into one VMEM operand (one DMA)
    zwb = jnp.stack([zs, w, b]).astype(jnp.float32).reshape(3, zt, 1)
    # pack all scalar parameters into one SMEM operand (one DMA)
    params = jnp.concatenate([
        a.reshape(-1).astype(jnp.float32),
        ll.reshape(-1).astype(jnp.float32),
        llb.reshape(-1).astype(jnp.float32),
    ])

    out = pl.pallas_call(
        functools.partial(_dnnp_kernel, n_layers=L_LAYERS),
        out_shape=jax.ShapeDtypeStruct((zt, OUT_LANES), jnp.float32),
        grid=(n_blocks,),
        in_specs=[
            pl.BlockSpec((3, Z_BLK, 1), lambda i: (0, i, 0)),         # zs/w/b
            pl.BlockSpec(memory_space=pltpu.MemorySpace.SMEM),        # params
        ],
        out_specs=pl.BlockSpec((Z_BLK, OUT_LANES), lambda i: (i, 0)),
        compiler_params=pltpu.CompilerParams(
            dimension_semantics=("parallel",)),
    )(zwb, params)

    return out[:, 0], out[:, 1]


def dnnp_reference(zs, w, b, a, ll, llb):
    """Pure-JAX reference with the straightforward math (same midpoint samples)."""
    u = (jnp.arange(N, dtype=jnp.float32) + 0.5) / N
    zs_c, w_c, b_c = zs[:, None], w[:, None], b[:, None]
    u_r = u[None, :]
    a_s = a[0]

    def mh(z):
        return 1.0 + a_s * z - (z * z * (w_c * z) + b_c)

    def mg(z):
        return (1.0 - z) * (1.0 + (a_s + 1.0) * z - (z * z * (w_c * z) + b_c))

    zu = zs_c * u_r
    gzu, hzu, hz = mg(zu), mh(zu), mh(zs_c)
    hr = (hzu / hz) ** 2
    u4 = u_r ** 4
    hr = jnp.where(hr < u4, hr, hr + u4)
    sq = jnp.sqrt(gzu * hzu * (hr - u4))
    l_m = jnp.mean(2.0 * zs_c * u_r * u_r / sq, axis=1, keepdims=True)
    c_m = -1.0 + jnp.mean((sq - 1.0) / (u_r * u_r), axis=1, keepdims=True)
    s_m = hz * l_m / (2.0 * zs_c * zs_c) + c_m / zs_c
    e = jnp.concatenate([l_m, s_m], axis=1)                    # (Z, 2)
    for layer in range(L_LAYERS):
        e = jnp.maximum(e @ ll[layer].T + llb[layer], 0.0)
    return e[:, 0], e[:, 1]


if __name__ == "__main__":
    key = jax.random.PRNGKey(0)
    k1, k2, k3, k4, k5 = jax.random.split(key, 5)

    # physical-model parameter (module's self.a) — scaled so the square-root
    # radicand stays positive over the integration domain
    a = 0.1 + 0.05 * jax.random.uniform(k1, (1,), dtype=jnp.float32)
    # meta-dendrite weights LL and meta-bias LLB (the module's randn inits)
    ll = jax.random.normal(k4, (L_LAYERS, 2, 2), dtype=jnp.float32)
    llb = jax.random.normal(k5, (L_LAYERS, 2), dtype=jnp.float32)

    # ---- module-faithful forward: 8 z-points (single (8,128)-vreg block) ----
    z8 = 8
    zs8 = jnp.linspace(0.1, 0.45, z8, dtype=jnp.float32)
    w8 = 0.01 * jax.random.uniform(k2, (z8,), dtype=jnp.float32)
    b8 = 0.01 * jax.random.uniform(k3, (z8,), dtype=jnp.float32)

    resl, resS = dnnp_forward(zs8, w8, b8, a, ll, llb)
    jax.block_until_ready((resl, resS))
    ref_l, ref_S = dnnp_reference(zs8, w8, b8, a, ll, llb)
    np.testing.assert_allclose(np.asarray(resl), np.asarray(ref_l),
                               rtol=5e-4, atol=5e-4)
    np.testing.assert_allclose(np.asarray(resS), np.asarray(ref_S),
                               rtol=5e-4, atol=5e-4)

    # ---- batched z-grid: 32 points -> grid of 4 "parallel" blocks ----
    z32 = 32
    zs32 = jnp.linspace(0.1, 0.45, z32, dtype=jnp.float32)
    w32 = 0.01 * jax.random.uniform(k2, (z32,), dtype=jnp.float32)
    b32 = 0.01 * jax.random.uniform(k3, (z32,), dtype=jnp.float32)

    resl_b, resS_b = dnnp_forward(zs32, w32, b32, a, ll, llb)
    jax.block_until_ready((resl_b, resS_b))
    ref_lb, ref_Sb = dnnp_reference(zs32, w32, b32, a, ll, llb)
    np.testing.assert_allclose(np.asarray(resl_b), np.asarray(ref_lb),
                               rtol=5e-4, atol=5e-4)
    np.testing.assert_allclose(np.asarray(resS_b), np.asarray(ref_Sb),
                               rtol=5e-4, atol=5e-4)

    print("KERNEL_OK")
</pallas_src>

<mosaic_0001>
module attributes {stable_mosaic.version = 11 : i64} {
  func.func @_dnnp_kernel(%arg0: i32, %arg1: memref<3x8x1xf32, #tpu.memory_space<vmem>>, %arg2: memref<19xf32, #tpu.memory_space<smem>>, %arg3: memref<8x128xf32, #tpu.memory_space<vmem>>) attributes {dimension_semantics = [#tpu.dimension_semantics<parallel>], iteration_bounds = array<i64: 1>, scalar_prefetch = 0 : i64, scratch_operands = 0 : i64, tpu.core_type = #tpu.core_type<tc>, window_params = [{transform_indices = @transform_0, window_bounds = array<i64: 3, 8, 1>}, {transform_indices = @transform_1, window_bounds = array<i64: 19>}, {transform_indices = @transform_2, window_bounds = array<i64: 8, 128>}]} {
    %c0 = arith.constant 0 : index
    %c0_0 = arith.constant 0 : index
    %c0_1 = arith.constant 0 : index
    %0 = vector.load %arg1[%c0, %c0_0, %c0_1] : memref<3x8x1xf32, #tpu.memory_space<vmem>>, vector<1x8x1xf32>
    %1 = vector.shape_cast %0 : vector<1x8x1xf32> to vector<8x1xf32>
    %c1 = arith.constant 1 : index
    %c0_2 = arith.constant 0 : index
    %c0_3 = arith.constant 0 : index
    %2 = vector.load %arg1[%c1, %c0_2, %c0_3] : memref<3x8x1xf32, #tpu.memory_space<vmem>>, vector<1x8x1xf32>
    %3 = vector.shape_cast %2 : vector<1x8x1xf32> to vector<8x1xf32>
    %c2 = arith.constant 2 : index
    %c0_4 = arith.constant 0 : index
    %c0_5 = arith.constant 0 : index
    %4 = vector.load %arg1[%c2, %c0_4, %c0_5] : memref<3x8x1xf32, #tpu.memory_space<vmem>>, vector<1x8x1xf32>
    %5 = vector.shape_cast %4 : vector<1x8x1xf32> to vector<8x1xf32>
    %c0_6 = arith.constant 0 : index
    %6 = memref.load %arg2[%c0_6] : memref<19xf32, #tpu.memory_space<smem>>
    %7 = tpu.iota {dimensions = array<i32: 1>} : vector<1x128xi32>
    %8 = arith.sitofp %7 : vector<1x128xi32> to vector<1x128xf32>
    %cst = arith.constant 5.000000e-01 : f32
    %9 = vector.broadcast %cst : f32 to vector<1x128xf32>
    %10 = arith.addf %8, %9 : vector<1x128xf32>
    %cst_7 = arith.constant 7.812500e-03 : f32
    %11 = vector.broadcast %cst_7 : f32 to vector<1x128xf32>
    %12 = arith.mulf %10, %11 : vector<1x128xf32>
    %13 = arith.mulf %12, %12 : vector<1x128xf32>
    %14 = arith.mulf %13, %13 : vector<1x128xf32>
    %15 = tpu.reciprocal %13 : vector<1x128xf32> -> vector<1x128xf32>
    %16 = vector.broadcast %1 : vector<8x1xf32> to vector<8x128xf32>
    %17 = vector.broadcast %12 : vector<1x128xf32> to vector<8x128xf32>
    %18 = arith.mulf %16, %17 : vector<8x128xf32>
    %19 = vector.broadcast %6 : f32 to vector<8x128xf32>
    %20 = arith.mulf %19, %18 : vector<8x128xf32>
    %cst_8 = arith.constant 1.000000e+00 : f32
    %21 = vector.broadcast %cst_8 : f32 to vector<8x128xf32>
    %22 = arith.addf %21, %20 : vector<8x128xf32>
    %23 = arith.mulf %18, %18 : vector<8x128xf32>
    %24 = vector.broadcast %3 : vector<8x1xf32> to vector<8x128xf32>
    %25 = arith.mulf %24, %18 : vector<8x128xf32>
    %26 = arith.mulf %23, %25 : vector<8x128xf32>
    %27 = vector.broadcast %5 : vector<8x1xf32> to vector<8x128xf32>
    %28 = arith.addf %26, %27 : vector<8x128xf32>
    %29 = arith.subf %22, %28 : vector<8x128xf32>
    %cst_9 = arith.constant 1.000000e+00 : f32
    %30 = vector.broadcast %cst_9 : f32 to vector<8x128xf32>
    %31 = arith.subf %30, %18 : vector<8x128xf32>
    %32 = arith.addf %29, %18 : vector<8x128xf32>
    %33 = arith.mulf %31, %32 : vector<8x128xf32>
    %34 = vector.broadcast %6 : f32 to vector<8x1xf32>
    %35 = arith.mulf %34, %1 : vector<8x1xf32>
    %cst_10 = arith.constant 1.000000e+00 : f32
    %36 = vector.broadcast %cst_10 : f32 to vector<8x1xf32>
    %37 = arith.addf %36, %35 : vector<8x1xf32>
    %38 = arith.mulf %1, %1 : vector<8x1xf32>
    %39 = arith.mulf %3, %1 : vector<8x1xf32>
    %40 = arith.mulf %38, %39 : vector<8x1xf32>
    %41 = arith.addf %40, %5 : vector<8x1xf32>
    %42 = arith.subf %37, %41 : vector<8x1xf32>
    %43 = tpu.reciprocal %42 : vector<8x1xf32> -> vector<8x1xf32>
    %44 = vector.broadcast %43 : vector<8x1xf32> to vector<8x128xf32>
    %45 = arith.mulf %29, %44 : vector<8x128xf32>
    %46 = arith.mulf %45, %45 : vector<8x128xf32>
    %47 = vector.broadcast %14 : vector<1x128xf32> to vector<8x128xf32>
    %48 = arith.cmpf olt, %46, %47 : vector<8x128xf32>
    %49 = vector.broadcast %14 : vector<1x128xf32> to vector<8x128xf32>
    %50 = arith.addf %46, %49 : vector<8x128xf32>
    %51 = arith.select %48, %46, %50 : vector<8x128xi1>, vector<8x128xf32>
    %52 = arith.mulf %33, %29 : vector<8x128xf32>
    %53 = vector.broadcast %14 : vector<1x128xf32> to vector<8x128xf32>
    %54 = arith.subf %51, %53 : vector<8x128xf32>
    %55 = arith.mulf %52, %54 : vector<8x128xf32>
    %56 = math.rsqrt %55 : vector<8x128xf32>
    %57 = arith.mulf %55, %56 : vector<8x128xf32>
    %cst_11 = arith.constant 2.000000e+00 : f32
    %58 = vector.broadcast %cst_11 : f32 to vector<8x1xf32>
    %59 = arith.mulf %58, %1 : vector<8x1xf32>
    %60 = vector.broadcast %59 : vector<8x1xf32> to vector<8x128xf32>
    %61 = vector.broadcast %13 : vector<1x128xf32> to vector<8x128xf32>
    %62 = arith.mulf %60, %61 : vector<8x128xf32>
    %63 = arith.mulf %62, %56 : vector<8x128xf32>
    %cst_12 = arith.constant 1.000000e+00 : f32
    %64 = vector.broadcast %cst_12 : f32 to vector<8x128xf32>
    %65 = arith.subf %57, %64 : vector<8x128xf32>
    %66 = vector.broadcast %15 : vector<1x128xf32> to vector<8x128xf32>
    %67 = arith.mulf %65, %66 : vector<8x128xf32>
    %cst_13 = arith.constant dense<0.000000e+00> : vector<8xf32>
    %68 = vector.multi_reduction <add>, %63, %cst_13 [1] : vector<8x128xf32> to vector<8xf32>
    %69 = vector.shape_cast %68 : vector<8xf32> to vector<8x1xf32>
    %cst_14 = arith.constant 1.280000e+02 : f32
    %70 = vector.broadcast %cst_14 : f32 to vector<8x1xf32>
    %71 = arith.divf %69, %70 : vector<8x1xf32>
    %cst_15 = arith.constant dense<0.000000e+00> : vector<8xf32>
    %72 = vector.multi_reduction <add>, %67, %cst_15 [1] : vector<8x128xf32> to vector<8xf32>
    %73 = vector.shape_cast %72 : vector<8xf32> to vector<8x1xf32>
    %cst_16 = arith.constant 1.280000e+02 : f32
    %74 = vector.broadcast %cst_16 : f32 to vector<8x1xf32>
    %75 = arith.divf %73, %74 : vector<8x1xf32>
    %cst_17 = arith.constant -1.000000e+00 : f32
    %76 = vector.broadcast %cst_17 : f32 to vector<8x1xf32>
    %77 = arith.addf %76, %75 : vector<8x1xf32>
    %78 = tpu.reciprocal %1 : vector<8x1xf32> -> vector<8x1xf32>
    %cst_18 = arith.constant 5.000000e-01 : f32
    %79 = vector.broadcast %cst_18 : f32 to vector<8x1xf32>
    %80 = arith.mulf %79, %42 : vector<8x1xf32>
    %81 = arith.mulf %80, %71 : vector<8x1xf32>
    %82 = arith.mulf %81, %78 : vector<8x1xf32>
    %83 = arith.mulf %82, %78 : vector<8x1xf32>
    %84 = arith.mulf %77, %78 : vector<8x1xf32>
    %85 = arith.addf %83, %84 : vector<8x1xf32>
    %c1_19 = arith.constant 1 : index
    %86 = memref.load %arg2[%c1_19] : memref<19xf32, #tpu.memory_space<smem>>
    %c2_20 = arith.constant 2 : index
    %87 = memref.load %arg2[%c2_20] : memref<19xf32, #tpu.memory_space<smem>>
    %c3 = arith.constant 3 : index
    %88 = memref.load %arg2[%c3] : memref<19xf32, #tpu.memory_space<smem>>
    %c4 = arith.constant 4 : index
    %89 = memref.load %arg2[%c4] : memref<19xf32, #tpu.memory_space<smem>>
    %c13 = arith.constant 13 : index
    %90 = memref.load %arg2[%c13] : memref<19xf32, #tpu.memory_space<smem>>
    %c14 = arith.constant 14 : index
    %91 = memref.load %arg2[%c14] : memref<19xf32, #tpu.memory_space<smem>>
    %92 = vector.broadcast %86 : f32 to vector<8x1xf32>
    %93 = arith.mulf %92, %71 : vector<8x1xf32>
    %94 = vector.broadcast %87 : f32 to vector<8x1xf32>
    %95 = arith.mulf %94, %85 : vector<8x1xf32>
    %96 = arith.addf %93, %95 : vector<8x1xf32>
    %97 = vector.broadcast %90 : f32 to vector<8x1xf32>
    %98 = arith.addf %96, %97 : vector<8x1xf32>
    %cst_21 = arith.constant 0.000000e+00 : f32
    %99 = vector.broadcast %cst_21 : f32 to vector<8x1xf32>
    %100 = arith.maximumf %98, %99 : vector<8x1xf32>
    %101 = vector.broadcast %88 : f32 to vector<8x1xf32>
    %102 = arith.mulf %101, %71 : vector<8x1xf32>
    %103 = vector.broadcast %89 : f32 to vector<8x1xf32>
    %104 = arith.mulf %103, %85 : vector<8x1xf32>
    %105 = arith.addf %102, %104 : vector<8x1xf32>
    %106 = vector.broadcast %91 : f32 to vector<8x1xf32>
    %107 = arith.addf %105, %106 : vector<8x1xf32>
    %cst_22 = arith.constant 0.000000e+00 : f32
    %108 = vector.broadcast %cst_22 : f32 to vector<8x1xf32>
    %109 = arith.maximumf %107, %108 : vector<8x1xf32>
    %c5 = arith.constant 5 : index
    %110 = memref.load %arg2[%c5] : memref<19xf32, #tpu.memory_space<smem>>
    %c6 = arith.constant 6 : index
    %111 = memref.load %arg2[%c6] : memref<19xf32, #tpu.memory_space<smem>>
    %c7 = arith.constant 7 : index
    %112 = memref.load %arg2[%c7] : memref<19xf32, #tpu.memory_space<smem>>
    %c8 = arith.constant 8 : index
    %113 = memref.load %arg2[%c8] : memref<19xf32, #tpu.memory_space<smem>>
    %c15 = arith.constant 15 : index
    %114 = memref.load %arg2[%c15] : memref<19xf32, #tpu.memory_space<smem>>
    %c16 = arith.constant 16 : index
    %115 = memref.load %arg2[%c16] : memref<19xf32, #tpu.memory_space<smem>>
    %116 = vector.broadcast %110 : f32 to vector<8x1xf32>
    %117 = arith.mulf %116, %100 : vector<8x1xf32>
    %118 = vector.broadcast %111 : f32 to vector<8x1xf32>
    %119 = arith.mulf %118, %109 : vector<8x1xf32>
    %120 = arith.addf %117, %119 : vector<8x1xf32>
    %121 = vector.broadcast %114 : f32 to vector<8x1xf32>
    %122 = arith.addf %120, %121 : vector<8x1xf32>
    %cst_23 = arith.constant 0.000000e+00 : f32
    %123 = vector.broadcast %cst_23 : f32 to vector<8x1xf32>
    %124 = arith.maximumf %122, %123 : vector<8x1xf32>
    %125 = vector.broadcast %112 : f32 to vector<8x1xf32>
    %126 = arith.mulf %125, %100 : vector<8x1xf32>
    %127 = vector.broadcast %113 : f32 to vector<8x1xf32>
    %128 = arith.mulf %127, %109 : vector<8x1xf32>
    %129 = arith.addf %126, %128 : vector<8x1xf32>
    %130 = vector.broadcast %115 : f32 to vector<8x1xf32>
    %131 = arith.addf %129, %130 : vector<8x1xf32>
    %cst_24 = arith.constant 0.000000e+00 : f32
    %132 = vector.broadcast %cst_24 : f32 to vector<8x1xf32>
    %133 = arith.maximumf %131, %132 : vector<8x1xf32>
    %c9 = arith.constant 9 : index
    %134 = memref.load %arg2[%c9] : memref<19xf32, #tpu.memory_space<smem>>
    %c10 = arith.constant 10 : index
    %135 = memref.load %arg2[%c10] : memref<19xf32, #tpu.memory_space<smem>>
    %c11 = arith.constant 11 : index
    %136 = memref.load %arg2[%c11] : memref<19xf32, #tpu.memory_space<smem>>
    %c12 = arith.constant 12 : index
    %137 = memref.load %arg2[%c12] : memref<19xf32, #tpu.memory_space<smem>>
    %c17 = arith.constant 17 : index
    %138 = memref.load %arg2[%c17] : memref<19xf32, #tpu.memory_space<smem>>
    %c18 = arith.constant 18 : index
    %139 = memref.load %arg2[%c18] : memref<19xf32, #tpu.memory_space<smem>>
    %140 = vector.broadcast %134 : f32 to vector<8x1xf32>
    %141 = arith.mulf %140, %124 : vector<8x1xf32>
    %142 = vector.broadcast %135 : f32 to vector<8x1xf32>
    %143 = arith.mulf %142, %133 : vector<8x1xf32>
    %144 = arith.addf %141, %143 : vector<8x1xf32>
    %145 = vector.broadcast %138 : f32 to vector<8x1xf32>
    %146 = arith.addf %144, %145 : vector<8x1xf32>
    %cst_25 = arith.constant 0.000000e+00 : f32
    %147 = vector.broadcast %cst_25 : f32 to vector<8x1xf32>
    %148 = arith.maximumf %146, %147 : vector<8x1xf32>
    %149 = vector.broadcast %136 : f32 to vector<8x1xf32>
    %150 = arith.mulf %149, %124 : vector<8x1xf32>
    %151 = vector.broadcast %137 : f32 to vector<8x1xf32>
    %152 = arith.mulf %151, %133 : vector<8x1xf32>
    %153 = arith.addf %150, %152 : vector<8x1xf32>
    %154 = vector.broadcast %139 : f32 to vector<8x1xf32>
    %155 = arith.addf %153, %154 : vector<8x1xf32>
    %cst_26 = arith.constant 0.000000e+00 : f32
    %156 = vector.broadcast %cst_26 : f32 to vector<8x1xf32>
    %157 = arith.maximumf %155, %156 : vector<8x1xf32>
    %158 = tpu.iota {dimensions = array<i32: 1>} : vector<8x128xi32>
    %c0_i32 = arith.constant 0 : i32
    %159 = vector.broadcast %c0_i32 : i32 to vector<8x128xi32>
    %160 = arith.cmpi eq, %158, %159 : vector<8x128xi32>
    %c1_i32 = arith.constant 1 : i32
    %161 = vector.broadcast %c1_i32 : i32 to vector<8x128xi32>
    %162 = arith.cmpi eq, %158, %161 : vector<8x128xi32>
    %cst_27 = arith.constant 0.000000e+00 : f32
    %163 = vector.shape_cast %157 : vector<8x1xf32> to vector<8x1xf32>
    %164 = vector.broadcast %163 : vector<8x1xf32> to vector<8x128xf32>
    %165 = vector.broadcast %cst_27 : f32 to vector<8x128xf32>
    %166 = arith.select %162, %164, %165 : vector<8x128xi1>, vector<8x128xf32>
    %167 = vector.shape_cast %148 : vector<8x1xf32> to vector<8x1xf32>
    %168 = vector.broadcast %167 : vector<8x1xf32> to vector<8x128xf32>
    %169 = arith.select %160, %168, %166 : vector<8x128xi1>, vector<8x128xf32>
    %c0_28 = arith.constant 0 : index
    %c0_29 = arith.constant 0 : index
    %170 = vector.load %arg3[%c0_28, %c0_29] : memref<8x128xf32, #tpu.memory_space<vmem>>, vector<8x128xf32>
    tpu.vector_store %arg3[%c0_28, %c0_29], %169 {strides = array<i32>} : memref<8x128xf32, #tpu.memory_space<vmem>>, vector<8x128xf32>,
    return
  }
  func.func @transform_0(%arg0: i32) -> (i32, i32, i32) {
    %c0_i32 = arith.constant 0 : i32
    %c0_i32_0 = arith.constant 0 : i32
    %c0_i32_1 = arith.constant 0 : i32
    return %c0_i32, %arg0, %c0_i32_0 : i32, i32, i32
  }
  func.func @transform_1(%arg0: i32) -> i32 {
    %c0_i32 = arith.constant 0 : i32
    %c0_i32_0 = arith.constant 0 : i32
    return %c0_i32 : i32
  }
  func.func @transform_2(%arg0: i32) -> (i32, i32) {
    %c0_i32 = arith.constant 0 : i32
    %c0_i32_0 = arith.constant 0 : i32
    return %arg0, %c0_i32 : i32, i32
  }
}

</mosaic_0001>

<llo_original>
// kernel: tpu_custom_call.1
$region0: #{tpu_custom_call.1}
  #allocation0 [shape = 'u32[]', space=smem, size = 0x4, offset = 0x4, fixed_abs, tag = 'smem constant byte address 0x4 - core index']
  #allocation1 [shape = 'u32[144,128]{1,0:T(1,128)}', space=vmem, size = 0x12000, scoped, tag = 'internal scratch']
  %s0 = inlined_call_operand.vmem [shape: f32[3,8,1], index: 0, kind: input, shape index: {}]
  %s1 = inlined_call_operand.vmem [shape: f32[19], index: 1, kind: input, shape index: {}]
  %s2 = inlined_call_operand.hbm [shape: f32[8,128], index: 2, kind: output, shape index: {}]
  %s3 = sld [smem:[#allocation0]]
  $region22: #{tpu_custom_call.1} parent=0
    _
  %s5 = ssub.s32 1, %s3
  %s6 = scalar_select 0, %s5, %s3
  $region1: #{tpu_custom_call.1} parent=0
    #allocation2 [shape = 'u8[512]{0}', space=smem, size = 0x200, scoped, tag = 'input window, operand 1, single buffered']
    #allocation3 [shape = 's32[1]{0}', space=sflag, size = 0x4, scoped, tag = 'scoped memory for tpu_custom_call.1']
    #allocation4 [shape = 's32[1]{0}', space=sflag, size = 0x4, scoped, tag = 'scoped memory for tpu_custom_call.1']
    #allocation5 [shape = 'u8[4096]{0}', space=vmem, size = 0x1000, scoped, tag = 'output window, operand 0, single buffered']
    %7 = vsyncpa [#allocation4], 0
    %8 = vsyncpa [#allocation3], 0
    // Predicated region
    $region2: #{tpu_custom_call.1} parent=1 // pred_check
      _
    $region3: #{tpu_custom_call.1} parent=1 // pred_check_branch
      %10 = sbr.rel (0) target = $region5
    $region4: #{tpu_custom_call.1} parent=1 // pred_region
      _
    $region5: #{tpu_custom_call.1} parent=1 // pred_fallthru
      _
    // Predicated region
    $region6: #{tpu_custom_call.1} parent=1 // pred_check
      _
    $region7: #{tpu_custom_call.1} parent=1 // pred_check_branch
      %12 = sbr.rel (0) target = $region9
    $region8: #{tpu_custom_call.1} parent=1 // pred_region
      %s14 = ssub.s32 16, 16
      %15 = vsyncadd [#allocation4], %s14
      %s17 = sshll.u32 %s1, 4
      %s18 = int_to_ptr.vmem [resolvable:$true] %s17
      %20 = dma.vmem_to_smem %s18, 16, [#allocation2], [#allocation4]
    $region9: #{tpu_custom_call.1} parent=1 // pred_fallthru
      _
    // Predicated region
    $region10: #{tpu_custom_call.1} parent=1 // pred_check
      _
    $region11: #{tpu_custom_call.1} parent=1 // pred_check_branch
      %22 = sbr.rel (0) target = $region13
    $region12: #{tpu_custom_call.1} parent=1 // pred_region
      %23 = dma.done [#allocation4], 16
    $region13: #{tpu_custom_call.1} parent=1 // pred_fallthru
      _
    %24 = sfence
    %v25 = vld [vmem:[%s0] sm:$0xff]
    %s26 = scalar_lea.vmem %s0, 8
    %v27 = vld [vmem:[%s26] sm:$0xff]
    %s28 = scalar_lea.vmem %s0, 16
    %v29 = vld [vmem:[%s28] sm:$0xff]
    %s30 = sld [smem:[#allocation2]]
    %v31 = vlaneseq
    %v32 = vand.u32 %v31, 127
    %v33 = vcvt.s32.f32 %v32
    %v34 = vadd.f32 %v33, 0.5
    %v35 = vmul.f32 %v34, 0.0078125
    %v36 = vmul.f32 %v35, %v35
    %v37 = vmul.f32 %v36, %v36
    %v38 = vrcp.pop %v36
    %40 = vset.pattern.permute.xlu0 0
    %41 = vperm.xlu0 %40, %v25
    %v42 = vpop.permute.xlu0 %41
    %v44 = vmul.f32 %v42, %v35
    %v45 = vstv %s30
    %v46 = vmul.f32 %v45, %v44
    %v47 = vadd.f32 %v46, 1.0
    %v48 = vmul.f32 %v44, %v44
    %50 = vset.pattern.permute.xlu0 0
    %51 = vperm.xlu0 %50, %v27
    %v52 = vpop.permute.xlu0 %51
    %v54 = vmul.f32 %v52, %v44
    %v55 = vmul.f32 %v48, %v54
    %57 = vset.pattern.permute.xlu0 0
    %58 = vperm.xlu0 %57, %v29
    %v59 = vpop.permute.xlu0 %58
    %v61 = vadd.f32 %v55, %v59
    %v62 = vsub.f32 %v47, %v61
    %v63 = vsub.f32 1.0, %v44
    %v64 = vadd.f32 %v62, %v44
    %v65 = vmul.f32 %v63, %v64
    %v66 = vmul.f32 %v45, %v25
    %v67 = vadd.f32 %v66, 1.0
    %v68 = vmul.f32 %v25, %v25
    %v69 = vmul.f32 %v27, %v25
    %v70 = vmul.f32 %v68, %v69
    %v71 = vadd.f32 %v70, %v29
    %v72 = vsub.f32 %v67, %v71
    %v73 = vrcp.pop %v72
    %75 = vset.pattern.permute.xlu0 0
    %76 = vperm.xlu0 %75, %v73
    %v77 = vpop.permute.xlu0 %76
    %v79 = vmul.f32 %v62, %v77
    %v80 = vmul.f32 %v79, %v79
    %vm81 = vcmp.lt.f32.partialorder %v80, %v37
    %v82 = vadd.f32 %v80, %v37
    %v83 = vsel %vm81, %v80, %v82
    %v84 = vmul.f32 %v65, %v62
    %v85 = vsub.f32 %v83, %v37
    %v86 = vmul.f32 %v84, %v85
    %v87 = vrsqrt.pop %v86
    %v88 = vmul.f32 %v86, %v87
    %v89 = vmul.f32 %v25, 2.0
    %91 = vset.pattern.permute.xlu0 0
    %92 = vperm.xlu0 %91, %v89
    %v93 = vpop.permute.xlu0 %92
    %v95 = vmul.f32 %v93, %v36
    %v96 = vmul.f32 %v95, %v87
    %v97 = vsub.f32 %v88, 1.0
    %v98 = vmul.f32 %v97, %v38
    %99 = vadd.xlane.f32.xlu0 %v96
    %v100 = vpop.xlane.xlu0 %99
    %v101 = vrcp.pop 128.0
    %v102 = vmul.f32 %v100, %v101
    %103 = vadd.xlane.f32.xlu0 %v98
    %v104 = vpop.xlane.xlu0 %103
    %v105 = vmul.f32 %v104, %v101
    %v106 = vadd.f32 %v105, -1.0
    %v107 = vrcp.pop %v25
    %v108 = vmul.f32 %v72, 0.5
    %v109 = vmul.f32 %v108, %v102
    %v110 = vmul.f32 %v109, %v107
    %v111 = vmul.f32 %v110, %v107
    %v112 = vmul.f32 %v106, %v107
    %v113 = vadd.f32 %v111, %v112
    %s114 = sld [smem:[#allocation2 + $0x1]]
    %s115 = sld [smem:[#allocation2 + $0x2]]
    %s116 = sld [smem:[#allocation2 + $0x3]]
    %s117 = sld [smem:[#allocation2 + $0x4]]
    %s118 = sld [smem:[#allocation2 + $0xd]]
    %s119 = sld [smem:[#allocation2 + $0xe]]
    %v120 = vstv %s114
    %v121 = vmul.f32 %v120, %v102
    %v122 = vstv %s115
    %v123 = vmul.f32 %v122, %v113
    %v124 = vadd.f32 %v121, %v123
    %v125 = vstv %s118
    %v126 = vadd.f32 %v124, %v125
    %v127 = vmax.f32 %v126, 0.0
    %v128 = vstv %s116
    %v129 = vmul.f32 %v128, %v102
    %v130 = vstv %s117
    %v131 = vmul.f32 %v130, %v113
    %v132 = vadd.f32 %v129, %v131
    %v133 = vstv %s119
    %v134 = vadd.f32 %v132, %v133
    %v135 = vmax.f32 %v134, 0.0
    %s136 = sld [smem:[#allocation2 + $0x5]]
    %s137 = sld [smem:[#allocation2 + $0x6]]
    %s138 = sld [smem:[#allocation2 + $0x7]]
    %s139 = sld [smem:[#allocation2 + $0x8]]
    %s140 = sld [smem:[#allocation2 + $0xf]]
    %s141 = sld [smem:[#allocation2 + $0x10]]
    %v142 = vstv %s136
    %v143 = vmul.f32 %v142, %v127
    %v144 = vstv %s137
    %v145 = vmul.f32 %v144, %v135
    %v146 = vadd.f32 %v143, %v145
    %v147 = vstv %s140
    %v148 = vadd.f32 %v146, %v147
    %v149 = vmax.f32 %v148, 0.0
    %v150 = vstv %s138
    %v151 = vmul.f32 %v150, %v127
    %v152 = vstv %s139
    %v153 = vmul.f32 %v152, %v135
    %v154 = vadd.f32 %v151, %v153
    %v155 = vstv %s141
    %v156 = vadd.f32 %v154, %v155
    %v157 = vmax.f32 %v156, 0.0
    %s158 = sld [smem:[#allocation2 + $0x9]]
    %s159 = sld [smem:[#allocation2 + $0xa]]
    %s160 = sld [smem:[#allocation2 + $0xb]]
    %s161 = sld [smem:[#allocation2 + $0xc]]
    %s162 = sld [smem:[#allocation2 + $0x11]]
    %s163 = sld [smem:[#allocation2 + $0x12]]
    %v164 = vstv %s158
    %v165 = vmul.f32 %v164, %v149
    %v166 = vstv %s159
    %v167 = vmul.f32 %v166, %v157
    %v168 = vadd.f32 %v165, %v167
    %v169 = vstv %s162
    %v170 = vadd.f32 %v168, %v169
    %v171 = vmax.f32 %v170, 0.0
    %v172 = vstv %s160
    %v173 = vmul.f32 %v172, %v149
    %v174 = vstv %s161
    %v175 = vmul.f32 %v174, %v157
    %v176 = vadd.f32 %v173, %v175
    %v177 = vstv %s163
    %v178 = vadd.f32 %v176, %v177
    %v179 = vmax.f32 %v178, 0.0
    %vm180 = vcmp.eq.s32.totalorder %v32, 0
    %vm181 = vcmp.eq.s32.totalorder %v32, 1
    %183 = vset.pattern.permute.xlu0 0
    %184 = vperm.xlu0 %183, %v179
    %v185 = vpop.permute.xlu0 %184
    %v187 = vsel %vm181, %v185, 0.0
    %189 = vset.pattern.permute.xlu0 0
    %190 = vperm.xlu0 %189, %v171
    %v191 = vpop.permute.xlu0 %190
    %v193 = vsel %vm180, %v191, %v187
    %194 = vst [vmem:[#allocation5] sm:$0xff] %v193
    // Predicated region
    $region14: #{tpu_custom_call.1} parent=1 // pred_check
      _
    $region15: #{tpu_custom_call.1} parent=1 // pred_check_branch
      %196 = sbr.rel (0) target = $region17
    $region16: #{tpu_custom_call.1} parent=1 // pred_region
      %s198 = ssub.s32 128, 128
      %199 = vsyncadd [#allocation3], %s198
      %s201 = sshll.u32 [#allocation5], 4
      %s202 = int_to_ptr.vmem [resolvable:$true] %s201
      %204 = dma.vmem_to_hbm [thread:$0]  %s202, 128, %s2, [#allocation3]
    $region17: #{tpu_custom_call.1} parent=1 // pred_fallthru
      _
    // Predicated region
    $region18: #{tpu_custom_call.1} parent=1 // pred_check
      _
    $region19: #{tpu_custom_call.1} parent=1 // pred_check_branch
      %206 = sbr.rel (0) target = $region21
    $region20: #{tpu_custom_call.1} parent=1 // pred_region
      %207 = dma.done [#allocation3], 128
    $region21: #{tpu_custom_call.1} parent=1 // pred_fallthru
      _
    %208 = vsyncpa [#allocation3], 1
    %209 = vsyncpa [#allocation4], 1

</llo_original>
